<compile_context>
chip_gen: v5e
topology: v5e:2x2
jax: 0.10.0
libtpu: 0.0.40
codegen_flags: <defaults>
</compile_context>

<pallas_src>
import functools
import math

import jax
import jax.numpy as jnp
from jax.experimental import pallas as pl
from jax.experimental.pallas import tpu as pltpu


LANES = 1024                       # lane width of the flattened slab (mult. of 128)
_VMEM_BUDGET = 10 * 1024 * 1024    # bytes for 2x-buffered input blocks (all gens)
_LN2 = math.log(2.0)


def _num_tensorcores():
    """Best-effort TensorCores-per-device.  v5e/v6e -> 1; v7x-class -> 2.

    Conservative default of 1 so single-TC chips never pay for a fake split."""
    try:
        kind = str(getattr(jax.devices()[0], "device_kind", "")).lower()
    except Exception:
        return 1
    if "v7" in kind or "tpu7" in kind:
        return 2
    return 1


def _bce_mask_kernel(x_ref, t_ref, m_ref, o_ref, acc_ref, *,
                     rows, row_tile, tiles_per_core, core_split,
                     needs_mask, mask_start_tile):
    if core_split == 1:
        step = pl.program_id(0)
        tile_idx = step
        num_steps = pl.num_programs(0)
    else:
        c = pl.program_id(0)
        step = pl.program_id(1)
        tile_idx = c * tiles_per_core + step
        num_steps = pl.num_programs(1)

    @pl.when(step == 0)
    def _():
        acc_ref[...] = jnp.zeros_like(acc_ref)

    m = m_ref[...].astype(jnp.float32)
    x = x_ref[...].astype(jnp.float32) * m
    z = t_ref[...].astype(jnp.float32) * m

    # Numerically stable BCE-with-logits (matches torch's implementation).
    loss = jnp.maximum(x, 0.0) - x * z + jnp.log1p(jnp.exp(-jnp.abs(x)))

    def _accumulate(vals):
        # Sublane-aligned 8-row slice adds: guaranteed pure vreg VALU work
        # hidden under the DMA of the next tile (no reshape -> no hidden copy,
        # no per-step XLU reduce, no per-step scalar RMW).
        if row_tile % 8 == 0:
            part = vals[0:8, :]
            for r in range(1, row_tile // 8):
                part = part + vals[8 * r:8 * (r + 1), :]
            acc_ref[...] += part
        else:
            # Tiny single-tile case (row_tile == rows < 8).
            acc_ref[...] += vals

    if needs_mask:
        # Steady-state tiles: unmasked fast path.
        @pl.when(tile_idx < mask_start_tile)
        def _():
            _accumulate(loss)

        # Only the ragged / fully-out-of-range tiles pay for the row mask.
        # Row-only compare (no flat index) -> int32-safe for any tensor size.
        # jnp.where is a select, so garbage in the OOB block region is safe.
        @pl.when(tile_idx >= mask_start_tile)
        def _():
            row_ids = tile_idx * row_tile + jax.lax.broadcasted_iota(
                jnp.int32, (row_tile, LANES), 0)
            _accumulate(jnp.where(row_ids < rows, loss, 0.0))
    else:
        _accumulate(loss)

    # Single cross-lane reduce + scalar store only on the last step.
    @pl.when(step == num_steps - 1)
    def _():
        o_ref[0, 0] = jnp.sum(acc_ref[...])


def bce_loss_with_mask(inp, target, mask):
    """Masked BCE-with-logits mean loss (PyTorch BCELossWithMask.forward)."""
    total = inp.size
    x = inp.reshape(-1)
    t = target.reshape(-1)
    m = mask.reshape(-1)

    # Pad ONLY to the next multiple of LANES when strictly needed (zero for
    # typical B*C*H*W).  Zero-padded elements contribute exactly ln(2) each to
    # the BCE sum (x = z = 0); corrected for below.  NOTE: this correction
    # relies on jnp.pad's zero fill.
    rem = total % LANES
    pad = (LANES - rem) if rem else 0
    if pad:
        x = jnp.pad(x, (0, pad))
        t = jnp.pad(t, (0, pad))
        m = jnp.pad(m, (0, pad))
    rows = (total + pad) // LANES

    x = x.reshape(rows, LANES)
    t = t.reshape(rows, LANES)
    m = m.reshape(rows, LANES)

    # Row tile sized from a ~10 MiB double-buffer budget (fits default scoped
    # VMEM on v5e/v6e/v7x); multiple of 32 rows so int8 producers also pack.
    bytes_per_elem = x.dtype.itemsize + t.dtype.itemsize + m.dtype.itemsize
    max_row_tile = max(32, (_VMEM_BUDGET // (2 * bytes_per_elem * LANES)) // 32 * 32)
    if rows <= max_row_tile:
        row_tile = rows            # single block == full array dims (always legal)
    else:
        row_tile = max_row_tile

    num_tiles = pl.cdiv(rows, row_tile)
    core_split = max(1, min(_num_tensorcores(), num_tiles))
    tiles_per_core = pl.cdiv(num_tiles, core_split)
    total_tiles = core_split * tiles_per_core

    ragged = (rows % row_tile) != 0
    needs_mask = ragged or (total_tiles != num_tiles)
    mask_start_tile = (num_tiles - 1) if ragged else num_tiles
    last_block = num_tiles - 1

    if core_split == 1:
        grid = (num_tiles,)
        in_map = lambda j: (j, 0)
        out_map = lambda j: (0, 0)
        dim_sem = ("arbitrary",)
    else:
        grid = (core_split, tiles_per_core)

        def in_map(c, j):
            idx = c * tiles_per_core + j
            if total_tiles != num_tiles:
                idx = jnp.minimum(idx, last_block)   # clamp fully-OOB tiles
            return (idx, 0)

        out_map = lambda c, j: (c, 0)
        # Real cross-TensorCore split (plain "parallel" does not change codegen).
        dim_sem = (pltpu.CORE_PARALLEL, pltpu.ARBITRARY)

    acc_rows = 8 if (row_tile % 8 == 0) else row_tile

    kernel = functools.partial(
        _bce_mask_kernel, rows=rows, row_tile=row_tile,
        tiles_per_core=tiles_per_core, core_split=core_split,
        needs_mask=needs_mask, mask_start_tile=mask_start_tile)

    in_spec = pl.BlockSpec((row_tile, LANES), in_map)

    partials = pl.pallas_call(
        kernel,
        out_shape=jax.ShapeDtypeStruct((core_split, 1), jnp.float32),
        grid_spec=pltpu.PrefetchScalarGridSpec(
            num_scalar_prefetch=0,
            grid=grid,
            in_specs=[in_spec, in_spec, in_spec],
            out_specs=pl.BlockSpec((1, 1), out_map, memory_space=pltpu.SMEM),
            scratch_shapes=[pltpu.VMEM((acc_rows, LANES), jnp.float32)],
        ),
        compiler_params=pltpu.CompilerParams(
            dimension_semantics=dim_sem,
            vmem_limit_bytes=32 * 1024 * 1024),
        cost_estimate=pl.CostEstimate(
            flops=8 * total,
            transcendentals=2 * total,
            bytes_accessed=x.nbytes + t.nbytes + m.nbytes + 4 * core_split),
    )(x, t, m)

    loss_sum = jnp.sum(partials)
    if pad:
        loss_sum = loss_sum - jnp.float32(pad) * jnp.float32(_LN2)
    return loss_sum / jnp.float32(total)


def _reference(inp, target, mask):
    b = inp.shape[0]
    x = inp.reshape(b, -1).astype(jnp.float32)
    t = target.reshape(b, -1).astype(jnp.float32)
    m = mask.reshape(b, -1).astype(jnp.float32)
    x = x * m
    t = t * m
    loss = jnp.maximum(x, 0.0) - x * t + jnp.log1p(jnp.exp(-jnp.abs(x)))
    return jnp.mean(loss)


if __name__ == "__main__":
    key = jax.random.PRNGKey(0)
    k1, k2, k3 = jax.random.split(key, 3)

    # Small shape consistent with the module (numel = 2048, LANES-aligned
    # -> zero-pad path, single tile).
    B, C, H, W = 2, 4, 16, 16
    inp = jax.random.normal(k1, (B, C, H, W), dtype=jnp.float32)
    # target / mask are binary -> exact in bf16; narrower dtypes cut HBM
    # traffic on this bandwidth-bound kernel (cast back to f32 in-kernel).
    target = (jax.random.uniform(k2, (B, C, H, W)) > 0.5).astype(jnp.bfloat16)
    mask = (jax.random.uniform(k3, (B, C, H, W)) > 0.3).astype(jnp.bfloat16)

    out = jax.block_until_ready(bce_loss_with_mask(inp, target, mask))
    ref = jax.block_until_ready(_reference(inp, target, mask))
    assert jnp.allclose(out, ref, rtol=1e-5, atol=1e-5), (out, ref)

    # Second check exercising the steady-state path: multi-tile grid, ragged
    # last tile, and a non-LANES-multiple numel (ln2 pad correction).
    B2, C2, H2, W2 = 2, 4, 500, 333    # numel = 1,332,000
    k4, k5, k6 = jax.random.split(jax.random.PRNGKey(0), 3)
    inp2 = jax.random.normal(k4, (B2, C2, H2, W2), dtype=jnp.float32)
    target2 = (jax.random.uniform(k5, (B2, C2, H2, W2)) > 0.5).astype(jnp.bfloat16)
    mask2 = (jax.random.uniform(k6, (B2, C2, H2, W2)) > 0.3).astype(jnp.bfloat16)

    out2 = jax.block_until_ready(bce_loss_with_mask(inp2, target2, mask2))
    ref2 = jax.block_until_ready(_reference(inp2, target2, mask2))
    assert jnp.allclose(out2, ref2, rtol=1e-4, atol=1e-5), (out2, ref2)

    print("KERNEL_OK")
</pallas_src>

<mosaic_0001>
module attributes {stable_mosaic.version = 11 : i64} {
  func.func @_bce_mask_kernel(%arg0: i32, %arg1: memref<2x1024xf32, #tpu.memory_space<vmem>>, %arg2: memref<2x1024xbf16, #tpu.memory_space<vmem>>, %arg3: memref<2x1024xbf16, #tpu.memory_space<vmem>>, %arg4: memref<1x1xf32, #tpu.memory_space<smem>>, %arg5: memref<2x1024xf32, #tpu.memory_space<vmem>>) attributes {dimension_semantics = [#tpu.dimension_semantics<arbitrary>], iteration_bounds = array<i64: 1>, scalar_prefetch = 0 : i64, scratch_operands = 1 : i64, tpu.core_type = #tpu.core_type<tc>, window_params = [{transform_indices = @transform_0, window_bounds = array<i64: 2, 1024>}, {transform_indices = @transform_1, window_bounds = array<i64: 2, 1024>}, {transform_indices = @transform_2, window_bounds = array<i64: 2, 1024>}, {transform_indices = @transform_3, window_bounds = array<i64: 1, 1>}]} {
    %c0_i32 = arith.constant 0 : i32
    %0 = arith.cmpi eq, %arg0, %c0_i32 : i32
    %1 = arith.extui %0 : i1 to i32
    %c0_i32_0 = arith.constant 0 : i32
    %2 = arith.cmpi ne, %1, %c0_i32_0 : i32
    scf.if %2 {
      %cst_13 = arith.constant 0.000000e+00 : f32
      %26 = vector.broadcast %cst_13 : f32 to vector<2x1024xf32>
      %c0_14 = arith.constant 0 : index
      %c0_15 = arith.constant 0 : index
      %27 = vector.load %arg5[%c0_14, %c0_15] : memref<2x1024xf32, #tpu.memory_space<vmem>>, vector<2x1024xf32>
      tpu.vector_store %arg5[%c0_14, %c0_15], %26 {strides = array<i32>} : memref<2x1024xf32, #tpu.memory_space<vmem>>, vector<2x1024xf32>,
    } else {
    }
    %c0 = arith.constant 0 : index
    %c0_1 = arith.constant 0 : index
    %3 = vector.load %arg3[%c0, %c0_1] : memref<2x1024xbf16, #tpu.memory_space<vmem>>, vector<2x1024xbf16>
    %4 = arith.extf %3 : vector<2x1024xbf16> to vector<2x1024xf32>
    %c0_2 = arith.constant 0 : index
    %c0_3 = arith.constant 0 : index
    %5 = vector.load %arg1[%c0_2, %c0_3] : memref<2x1024xf32, #tpu.memory_space<vmem>>, vector<2x1024xf32>
    %6 = arith.mulf %5, %4 : vector<2x1024xf32>
    %c0_4 = arith.constant 0 : index
    %c0_5 = arith.constant 0 : index
    %7 = vector.load %arg2[%c0_4, %c0_5] : memref<2x1024xbf16, #tpu.memory_space<vmem>>, vector<2x1024xbf16>
    %8 = arith.extf %7 : vector<2x1024xbf16> to vector<2x1024xf32>
    %9 = arith.mulf %8, %4 : vector<2x1024xf32>
    %cst = arith.constant 0.000000e+00 : f32
    %10 = vector.broadcast %cst : f32 to vector<2x1024xf32>
    %11 = arith.maximumf %6, %10 : vector<2x1024xf32>
    %12 = arith.mulf %6, %9 : vector<2x1024xf32>
    %13 = arith.subf %11, %12 : vector<2x1024xf32>
    %14 = math.absf %6 : vector<2x1024xf32>
    %cst_6 = arith.constant 0.000000e+00 : f32
    %15 = vector.broadcast %cst_6 : f32 to vector<2x1024xf32>
    %16 = arith.subf %15, %14 : vector<2x1024xf32>
    %17 = math.exp %16 : vector<2x1024xf32>
    %18 = math.log1p %17 : vector<2x1024xf32>
    %19 = arith.addf %13, %18 : vector<2x1024xf32>
    %c0_7 = arith.constant 0 : index
    %c0_8 = arith.constant 0 : index
    %20 = vector.load %arg5[%c0_7, %c0_8] : memref<2x1024xf32, #tpu.memory_space<vmem>>, vector<2x1024xf32>
    %21 = arith.addf %20, %19 : vector<2x1024xf32>
    %c0_9 = arith.constant 0 : index
    %c0_10 = arith.constant 0 : index
    %22 = vector.load %arg5[%c0_9, %c0_10] : memref<2x1024xf32, #tpu.memory_space<vmem>>, vector<2x1024xf32>
    tpu.vector_store %arg5[%c0_9, %c0_10], %21 {strides = array<i32>} : memref<2x1024xf32, #tpu.memory_space<vmem>>, vector<2x1024xf32>,
    %c0_i32_11 = arith.constant 0 : i32
    %23 = arith.cmpi eq, %arg0, %c0_i32_11 : i32
    %24 = arith.extui %23 : i1 to i32
    %c0_i32_12 = arith.constant 0 : i32
    %25 = arith.cmpi ne, %24, %c0_i32_12 : i32
    scf.if %25 {
      %c0_13 = arith.constant 0 : index
      %c0_14 = arith.constant 0 : index
      %26 = vector.load %arg5[%c0_13, %c0_14] : memref<2x1024xf32, #tpu.memory_space<vmem>>, vector<2x1024xf32>
      %27 = vector.shape_cast %26 : vector<2x1024xf32> to vector<1x2x1024xf32>
      %cst_15 = arith.constant dense<0.000000e+00> : vector<1xf32>
      %28 = vector.multi_reduction <add>, %27, %cst_15 [1, 2] : vector<1x2x1024xf32> to vector<1xf32>
      %29 = vector.shape_cast %28 : vector<1xf32> to vector<1x1x1xf32>
      %30 = vector.extract %29[0, 0, 0] : f32 from vector<1x1x1xf32>
      %c0_16 = arith.constant 0 : index
      %c0_17 = arith.constant 0 : index
      %31 = memref.load %arg4[%c0_16, %c0_17] : memref<1x1xf32, #tpu.memory_space<smem>>
      memref.store %30, %arg4[%c0_16, %c0_17] : memref<1x1xf32, #tpu.memory_space<smem>>
    } else {
    }
    return
  }
  func.func @transform_0(%arg0: i32) -> (i32, i32) {
    %c0_i32 = arith.constant 0 : i32
    %c0_i32_0 = arith.constant 0 : i32
    return %arg0, %c0_i32 : i32, i32
  }
  func.func @transform_1(%arg0: i32) -> (i32, i32) {
    %c0_i32 = arith.constant 0 : i32
    %c0_i32_0 = arith.constant 0 : i32
    return %arg0, %c0_i32 : i32, i32
  }
  func.func @transform_2(%arg0: i32) -> (i32, i32) {
    %c0_i32 = arith.constant 0 : i32
    %c0_i32_0 = arith.constant 0 : i32
    return %arg0, %c0_i32 : i32, i32
  }
  func.func @transform_3(%arg0: i32) -> (i32, i32) {
    %c0_i32 = arith.constant 0 : i32
    %c0_i32_0 = arith.constant 0 : i32
    %c0_i32_1 = arith.constant 0 : i32
    return %c0_i32, %c0_i32_0 : i32, i32
  }
}

</mosaic_0001>

<llo_original>
// kernel: tpu_custom_call.1
$region0: #{tpu_custom_call.1}
  #allocation0 [shape = 'u32[]', space=smem, size = 0x4, offset = 0x4, fixed_abs, tag = 'smem constant byte address 0x4 - core index']
  #allocation1 [shape = 'u32[72,128]{1,0:T(1,128)}', space=vmem, size = 0x9000, scoped, tag = 'internal scratch']
  #allocation2 [shape = 'f32[2,1024]{1,0:T(2,128)}', space=vmem, size = 0x2000, scoped, tag = 'scratch operand']
  %s0 = inlined_call_operand.hbm [shape: f32[2,1024], index: 0, kind: input, shape index: {}]
  %s1 = inlined_call_operand.hbm [shape: bf16[2,1024], index: 1, kind: input, shape index: {}]
  %s2 = inlined_call_operand.hbm [shape: bf16[2,1024], index: 2, kind: input, shape index: {}]
  %s3 = inlined_call_operand.hbm [shape: f32[1,1], index: 3, kind: output, shape index: {}]
  %s4 = sld [smem:[#allocation0]]
  $region42: #{tpu_custom_call.1} parent=0
    _
  %s6 = ssub.s32 1, %s4
  %s7 = scalar_select 0, %s6, %s4
  $region1: #{tpu_custom_call.1} parent=0
    #allocation3 [shape = 'u8[8192]{0}', space=vmem, size = 0x2000, scoped, tag = 'input window, operand 0, single buffered']
    #allocation4 [shape = 's32[1]{0}', space=sflag, size = 0x4, scoped, tag = 'scoped memory for tpu_custom_call.1']
    #allocation5 [shape = 's32[1]{0}', space=sflag, size = 0x4, scoped, tag = 'scoped memory for tpu_custom_call.1']
    #allocation6 [shape = 'u8[4096]{0}', space=vmem, size = 0x1000, scoped, tag = 'input window, operand 1, single buffered']
    #allocation7 [shape = 's32[1]{0}', space=sflag, size = 0x4, scoped, tag = 'scoped memory for tpu_custom_call.1']
    #allocation8 [shape = 'u8[4096]{0}', space=vmem, size = 0x1000, scoped, tag = 'input window, operand 2, single buffered']
    #allocation9 [shape = 'u8[512]{0}', space=smem, size = 0x200, scoped, tag = 'output window, operand 0, single buffered']
    %8 = vsyncpa [#allocation4], 0
    %9 = vsyncpa [#allocation7], 0
    %10 = vsyncpa [#allocation5], 0
    // Predicated region
    $region2: #{tpu_custom_call.1} parent=1 // pred_check
      _
    $region3: #{tpu_custom_call.1} parent=1 // pred_check_branch
      %12 = sbr.rel (0) target = $region5
    $region4: #{tpu_custom_call.1} parent=1 // pred_region
      %14 = vsyncadd [#allocation4], 0
      %s16 = sshll.u32 %s0, 4
      %s17 = int_to_ptr.hbm [resolvable:$true] %s16
      %s18 = sshll.u32 [#allocation3], 4
      %s19 = int_to_ptr.vmem [resolvable:$true] %s18
      %21 = dma.hbm_to_vmem [thread:$0]  %s17, 256, %s19, [#allocation4]
    $region5: #{tpu_custom_call.1} parent=1 // pred_fallthru
      _
    // Predicated region
    $region6: #{tpu_custom_call.1} parent=1 // pred_check
      _
    $region7: #{tpu_custom_call.1} parent=1 // pred_check_branch
      %23 = sbr.rel (0) target = $region9
    $region8: #{tpu_custom_call.1} parent=1 // pred_region
      %25 = vsyncadd [#allocation7], 0
      %s27 = sshll.u32 %s1, 4
      %s28 = int_to_ptr.hbm [resolvable:$true] %s27
      %s29 = sshll.u32 [#allocation6], 4
      %s30 = int_to_ptr.vmem [resolvable:$true] %s29
      %32 = dma.hbm_to_vmem [thread:$0]  %s28, 128, %s30, [#allocation7]
    $region9: #{tpu_custom_call.1} parent=1 // pred_fallthru
      _
    // Predicated region
    $region10: #{tpu_custom_call.1} parent=1 // pred_check
      _
    $region11: #{tpu_custom_call.1} parent=1 // pred_check_branch
      %34 = sbr.rel (0) target = $region13
    $region12: #{tpu_custom_call.1} parent=1 // pred_region
      %36 = vsyncadd [#allocation7], 0
      %s38 = sshll.u32 %s2, 4
      %s39 = int_to_ptr.hbm [resolvable:$true] %s38
      %s40 = sshll.u32 [#allocation8], 4
      %s41 = int_to_ptr.vmem [resolvable:$true] %s40
      %43 = dma.hbm_to_vmem [thread:$0]  %s39, 128, %s41, [#allocation7]
    $region13: #{tpu_custom_call.1} parent=1 // pred_fallthru
      _
    // Predicated region
    $region14: #{tpu_custom_call.1} parent=1 // pred_check
      _
    $region15: #{tpu_custom_call.1} parent=1 // pred_check_branch
      %45 = sbr.rel (0) target = $region17
    $region16: #{tpu_custom_call.1} parent=1 // pred_region
      %47 = dma.done [#allocation4], 256
    $region17: #{tpu_custom_call.1} parent=1 // pred_fallthru
      _
    // Predicated region
    $region18: #{tpu_custom_call.1} parent=1 // pred_check
      _
    $region19: #{tpu_custom_call.1} parent=1 // pred_check_branch
      %49 = sbr.rel (0) target = $region21
    $region20: #{tpu_custom_call.1} parent=1 // pred_region
      %51 = dma.done [#allocation7], 128
    $region21: #{tpu_custom_call.1} parent=1 // pred_fallthru
      _
    // Predicated region
    $region22: #{tpu_custom_call.1} parent=1 // pred_check
      _
    $region23: #{tpu_custom_call.1} parent=1 // pred_check_branch
      %53 = sbr.rel (0) target = $region25
    $region24: #{tpu_custom_call.1} parent=1 // pred_region
      %55 = dma.done [#allocation7], 128
    $region25: #{tpu_custom_call.1} parent=1 // pred_fallthru
      _
    %p56 = scmp.eq.s32.totalorder 0, 0
    // Predicated region
    $region26: #{tpu_custom_call.1} parent=1 // pred_check
      %p57 = pneg %p56
    $region27: #{tpu_custom_call.1} parent=1 // pred_check_branch
      %59 = sbr.rel (%p57) target = $region29
    $region28: #{tpu_custom_call.1} parent=1 // pred_region
      %60 = vst [vmem:[#allocation2] sm:$0xff] 0.0
      %61 = vst [vmem:[#allocation2 + $0x8] sm:$0xff] 0.0
    $region29: #{tpu_custom_call.1} parent=1 // pred_fallthru
      _
    %v62 = vld [vmem:[#allocation8] sm:$0xff]
    %v63 = vunpack.c.l.bf16 %v62
    %v64 = vunpack.c.h.bf16 %v62
    %v65 = vld [vmem:[#allocation3] sm:$0xff]
    %v66 = vld [vmem:[#allocation3 + $0x8] sm:$0xff]
    %v67 = vmul.f32 %v65, %v63
    %v68 = vmul.f32 %v66, %v64
    %v69 = vld [vmem:[#allocation6] sm:$0xff]
    %v70 = vunpack.c.l.bf16 %v69
    %v71 = vunpack.c.h.bf16 %v69
    %v72 = vmul.f32 %v70, %v63
    %v73 = vmul.f32 %v71, %v64
    %v74 = vmax.f32 %v67, 0.0
    %v75 = vmax.f32 %v68, 0.0
    %v76 = vmul.f32 %v67, %v72
    %v77 = vmul.f32 %v68, %v73
    %v78 = vsub.f32 %v74, %v76
    %v79 = vsub.f32 %v75, %v77
    %v80 = vand.u32 2147483647, %v67
    %v81 = vand.u32 2147483647, %v68
    %v82 = vsub.f32 0.0, %v80
    %v83 = vsub.f32 0.0, %v81
    %v84 = vmul.f32 %v82, 1.442695
    %v85 = vpow.pop %v84
    %v86 = vmul.f32 %v83, 1.442695
    %v87 = vpow.pop %v86
    %v88 = vadd.f32 %v85, 1.0
    %v89 = vlog2.pop %v88
    %v90 = vmul.f32 %v89, 0.6931472
    %v91 = vmul.f32 -0.5, %v85
    %v92 = vadd.f32 %v91, 1.0
    %v93 = vmul.f32 %v92, %v85
    %v94 = vand.u32 2147483647, %v85
    %vm95 = vcmp.lt.f32.partialorder %v94, 0.0004427343
    %v96 = vsel %vm95, %v93, %v90
    %v97 = vadd.f32 %v87, 1.0
    %v98 = vlog2.pop %v97
    %v99 = vmul.f32 %v98, 0.6931472
    %v100 = vmul.f32 -0.5, %v87
    %v101 = vadd.f32 %v100, 1.0
    %v102 = vmul.f32 %v101, %v87
    %v103 = vand.u32 2147483647, %v87
    %vm104 = vcmp.lt.f32.partialorder %v103, 0.0004427343
    %v105 = vsel %vm104, %v102, %v99
    %v106 = vadd.f32 %v78, %v96
    %v107 = vadd.f32 %v79, %v105
    %v108 = vld [vmem:[#allocation2] sm:$0xff]
    %v109 = vld [vmem:[#allocation2 + $0x8] sm:$0xff]
    %v110 = vadd.f32 %v108, %v106
    %v111 = vadd.f32 %v109, %v107
    %112 = vst [vmem:[#allocation2] sm:$0xff] %v110
    %113 = vst [vmem:[#allocation2 + $0x8] sm:$0xff] %v111
    // Predicated region
    $region30: #{tpu_custom_call.1} parent=1 // pred_check
      %p114 = pneg %p56
    $region31: #{tpu_custom_call.1} parent=1 // pred_check_branch
      %116 = sbr.rel (%p114) target = $region33
    $region32: #{tpu_custom_call.1} parent=1 // pred_region
      %v117 = vld [vmem:[#allocation2] sm:$0xff]
      %v118 = vld [vmem:[#allocation2 + $0x8] sm:$0xff]
      %121 = vst [vmem:[#allocation1] ss:$4 sm:$0xff] %v117
      %s122 = scalar_lea.vmem [#allocation1], 32
      %123 = vst [vmem:[%s122] ss:$4 sm:$0xff] %v118
      %v124 = vld.sshfl [vmem:[#allocation1] sm:$0xff pattern:$0x73625140]
      %v125 = vld.sshfl [vmem:[#allocation1 + $0x8] sm:$0xff pattern:$0x73625140]
      %v126 = vld.sshfl [vmem:[#allocation1 + $0x10] sm:$0xff pattern:$0x73625140]
      %v127 = vld.sshfl [vmem:[#allocation1 + $0x18] sm:$0xff pattern:$0x73625140]
      %v128 = vld.sshfl [vmem:[#allocation1 + $0x20] sm:$0xff pattern:$0x73625140]
      %v129 = vld.sshfl [vmem:[#allocation1 + $0x28] sm:$0xff pattern:$0x73625140]
      %v130 = vld.sshfl [vmem:[#allocation1 + $0x30] sm:$0xff pattern:$0x73625140]
      %v131 = vld.sshfl [vmem:[#allocation1 + $0x38] sm:$0xff pattern:$0x73625140]
      %vm140 = vcmask 1041408
      %v141 = vsel %vm140, %v124, 0.0
      %v142 = vsel %vm140, %v125, 0.0
      %v143 = vadd.f32 %v141, %v142
      %v144 = vsel %vm140, %v126, 0.0
      %v145 = vadd.f32 %v143, %v144
      %v146 = vsel %vm140, %v127, 0.0
      %v147 = vadd.f32 %v145, %v146
      %v148 = vsel %vm140, %v128, 0.0
      %v149 = vadd.f32 %v147, %v148
      %v150 = vsel %vm140, %v129, 0.0
      %v151 = vadd.f32 %v149, %v150
      %v152 = vsel %vm140, %v130, 0.0
      %v153 = vadd.f32 %v151, %v152
      %v154 = vsel %vm140, %v131, 0.0
      %v155 = vadd.f32 %v153, %v154
      %156 = vadd.xlane.f32.xlu0 %v155
      %v157 = vpop.xlane.xlu0 %156
      %v158 = vrot.slane %v157, 4
      %v159 = vadd.f32 %v157, %v158
      %v160 = vrot.slane %v159, 2
      %v161 = vadd.f32 %v159, %v160
      %v162 = vrot.slane %v161, 1
      %v163 = vadd.f32 %v161, %v162
      %s164 = vtos %v163
      %s165 = scalar_lea.smem [#allocation9], 0
      %166 = sst [smem:[%s165]] %s164
    $region33: #{tpu_custom_call.1} parent=1 // pred_fallthru
      _
    // Predicated region
    $region34: #{tpu_custom_call.1} parent=1 // pred_check
      _
    $region35: #{tpu_custom_call.1} parent=1 // pred_check_branch
      %168 = sbr.rel (0) target = $region37
    $region36: #{tpu_custom_call.1} parent=1 // pred_region
      %170 = vsyncadd [#allocation5], 0
      %s172 = sshll.u32 %s3, 4
      %s173 = int_to_ptr.hbm [resolvable:$true] %s172
      %175 = dma.smem_to_hbm [#allocation9], 16, %s173, [#allocation5]
    $region37: #{tpu_custom_call.1} parent=1 // pred_fallthru
      _
    // Predicated region
    $region38: #{tpu_custom_call.1} parent=1 // pred_check
      _
    $region39: #{tpu_custom_call.1} parent=1 // pred_check_branch
      %177 = sbr.rel (0) target = $region41
    $region40: #{tpu_custom_call.1} parent=1 // pred_region
      %179 = dma.done [#allocation5], 16
    $region41: #{tpu_custom_call.1} parent=1 // pred_fallthru
      _
    %180 = sfence
    %181 = vsyncpa [#allocation4], 1
    %182 = vsyncpa [#allocation7], 1
    %183 = vsyncpa [#allocation5], 1

</llo_original>
